<compile_context>
chip_gen: v7x
topology: tpu7x:2x2x1
jax: 0.10.0
libtpu: 0.0.40
codegen_flags: <defaults>
</compile_context>

<pallas_src>
import functools

import numpy as np
import jax
import jax.numpy as jnp
from jax import lax
from jax.experimental import pallas as pl
from jax.experimental.pallas import tpu as pltpu


def _round_up(n, m):
    return ((n + m - 1) // m) * m


def _multi_embedding_kernel(x_ref, w_ref, out_ref, *, num_fields, v_padded, v_max):
    """x_ref: [TB, F] int32, w_ref: [F*Vp, TD] (stacked & pre-masked), out_ref: [TB, TD]."""
    x = x_ref[...]                                       # [TB, F] int32
    x = jnp.clip(x, 0, v_max - 1)                        # guard out-of-range indices
    w = w_ref[...]                                       # [F*Vp, TD]
    tb = x.shape[0]
    k_dim = num_fields * v_padded

    # Hoisted iota, reused for every field compare.
    iota = lax.broadcasted_iota(jnp.int32, (tb, k_dim), 1)

    # Stacked one-hot: field f occupies K range [f*Vp, f*Vp + V); ranges are
    # disjoint, so OR-ing per-field compares builds the concatenated one-hot.
    onehot_b = iota == x[:, 0:1]
    for f in range(1, num_fields):
        onehot_b = jnp.logical_or(onehot_b, iota == (x[:, f:f + 1] + f * v_padded))
    onehot = onehot_b.astype(w.dtype)                    # exact 0/1

    # One MXU matmul gathers every field's row into its (pre-masked) column range.
    out_ref[...] = jnp.dot(onehot, w,
                           preferred_element_type=jnp.float32).astype(out_ref.dtype)


def build_stacked_weight(weight, membership_index, num_fields):
    """W'[f*Vp + v, d] = weight[v, d] if membership[d] == f else 0.  Shape [F*Vp, D].

    Hoist this out of the per-call path (precompute once per weight)."""
    V, D = weight.shape
    Vp = _round_up(V, 8)
    member = membership_index.astype(jnp.int32)
    fmask = (member[None, :] ==
             jnp.arange(num_fields, dtype=jnp.int32)[:, None]).astype(weight.dtype)  # [F, D]
    w3 = weight[None, :, :] * fmask[:, None, :]                                      # [F, V, D]
    w3 = jnp.pad(w3, ((0, 0), (0, Vp - V), (0, 0)))                                  # [F, Vp, D]
    return w3.reshape(num_fields * Vp, D)


def _pick_d_tile(D, weight_bytes, block_d):
    """Tile D only when necessary (big stacked weight) and only in 128-multiples."""
    if block_d is not None and block_d != D:
        if D % block_d == 0 and block_d % 128 == 0:
            return block_d
        return D
    if weight_bytes > 24 * 1024 * 1024 and D % 128 == 0:
        for cand in range(2048, 0, -128):
            if cand <= D and D % cand == 0:
                return cand
    return D


def fast_multi_embedding(x, weight, membership_index, *, block_b=1024, block_d=None,
                         stacked_weight=None):
    """x: [B, F] int, weight: [V, D_total], membership_index: [D_total] int."""
    x = x.astype(jnp.int32)
    B, F = x.shape
    V, D = weight.shape
    Vp = _round_up(V, 8)
    itemsize = weight.dtype.itemsize

    if stacked_weight is None:
        stacked_weight = build_stacked_weight(weight, membership_index, F)

    # --- D (N) tiling: only when the stacked weight is too big to sit in VMEM. ---
    TD = _pick_d_tile(D, F * Vp * D * itemsize, block_d)
    grid_d = D // TD

    # --- Adaptive batch tile: never leaves a nearly-empty last tile. ---
    block_b = max(8, int(block_b))
    num_b_tiles = -(-B // block_b)
    TB = _round_up(-(-B // num_b_tiles), 8)
    Bp = _round_up(B, TB)
    if Bp != B:
        x = jnp.pad(x, ((0, Bp - B), (0, 0)))   # index 0 is always valid for pad rows
    grid_b = Bp // TB

    # --- Honest VMEM budget, capped at 75% of reported per-core VMEM. ---
    try:
        vmem_cap = int(pltpu.get_tpu_info().vmem_capacity_bytes)
    except Exception:
        vmem_cap = 64 * 1024 * 1024            # conservative (v7x per-TC) fallback
    cap = int(0.75 * vmem_cap)

    def _vmem_limit(w_buffers):
        est = (w_buffers * F * Vp * TD * itemsize      # resident weight tile(s)
               + 2 * TB * F * 4                        # double-buffered x tiles
               + 2 * TB * TD * itemsize                # double-buffered out tiles
               + TB * F * Vp * (4 + 1))                # one-hot f32 + bool transients
        return int(min(est + 8 * 1024 * 1024, cap))    # a few MiB headroom

    kernel = functools.partial(_multi_embedding_kernel,
                               num_fields=F, v_padded=Vp, v_max=V)

    w_index_map = lambda d, b: (0, d)

    def _weight_spec(single_buffer):
        """Weight is (nearly) never re-fetched -> request single buffering."""
        if single_buffer:
            try:
                return pl.BlockSpec((F * Vp, TD), w_index_map,
                                    pipeline_mode=pl.Buffered(buffer_count=1)), 1
            except (TypeError, AttributeError):
                pass
        return pl.BlockSpec((F * Vp, TD), w_index_map), 2

    def _invoke(w_spec, w_buffers):
        return pl.pallas_call(
            kernel,
            out_shape=jax.ShapeDtypeStruct((Bp, D), weight.dtype),
            grid_spec=pltpu.PrefetchScalarGridSpec(
                num_scalar_prefetch=0,
                grid=(grid_d, grid_b),                    # d outer, batch inner (streams)
                in_specs=[
                    pl.BlockSpec((TB, F), lambda d, b: (b, 0)),   # x: streamed per tile
                    w_spec,                                       # stacked weight tile
                ],
                out_specs=pl.BlockSpec((TB, TD), lambda d, b: (b, d)),  # last dim == D or 128-mult
            ),
            compiler_params=pltpu.CompilerParams(
                dimension_semantics=("parallel", "parallel"),
                vmem_limit_bytes=_vmem_limit(w_buffers),
            ),
        )(x, stacked_weight)

    w_spec, nbuf = _weight_spec(True)
    if nbuf == 1:
        try:
            out = _invoke(w_spec, 1)
        except Exception:
            # Fall back to default double-buffering if Buffered(1) is not supported.
            w_spec, nbuf = _weight_spec(False)
            out = _invoke(w_spec, nbuf)
    else:
        out = _invoke(w_spec, nbuf)

    return out if Bp == B else out[:B]


if __name__ == "__main__":
    key = jax.random.PRNGKey(0)

    def run_case(embedding_sizes, embedding_dims, B, block_b, block_d, key):
        F = len(embedding_sizes)
        V = max(embedding_sizes)
        D = sum(embedding_dims)

        # membership_index buffer: column j -> owning field (mirrors __init__).
        membership_index = jnp.asarray(
            [i for i, v in enumerate(embedding_dims) for _ in range(v)], dtype=jnp.int32)

        key, kw = jax.random.split(key)
        weight = jax.random.normal(kw, (V, D), dtype=jnp.float32)   # reset_parameters()

        cols = []
        for sz in embedding_sizes:
            key, kf = jax.random.split(key)
            cols.append(jax.random.randint(kf, (B, 1), 0, sz, dtype=jnp.int32))
        x = jnp.concatenate(cols, axis=1)                           # [B, F]

        # Hoist the stacked-weight build out of the forward path (precompute once).
        w_stacked = build_stacked_weight(weight, membership_index, F)

        out = fast_multi_embedding(x, weight, membership_index,
                                   block_b=block_b, block_d=block_d,
                                   stacked_weight=w_stacked)
        out = jax.block_until_ready(out)

        # Pure-JAX reference of the PyTorch forward.
        idx = jnp.take(x, membership_index, axis=1)                 # [B, D]
        ref = jnp.take_along_axis(weight, idx, axis=0)              # [B, D]
        np.testing.assert_allclose(np.asarray(out), np.asarray(ref), rtol=1e-6, atol=1e-6)
        return key

    # Case 1: tiny D (=32), no D padding (lane-masked but minimal output stores);
    # B=13 exercises adaptive TB + batch pad/slice; 2 batch grid steps.
    key = run_case([10, 7, 5], [8, 16, 8], B=13, block_b=8, block_d=None, key=key)

    # Case 2: larger D (=256) with forced block_d=128: exercises the D (N) tiling
    # grid axis used when the stacked weight would not fit comfortably in v7x VMEM.
    key = run_case([10, 7, 5], [128, 64, 64], B=16, block_b=8, block_d=128, key=key)

    print("KERNEL_OK")
</pallas_src>

<mosaic_0001>
module attributes {stable_mosaic.version = 11 : i64} {
  func.func @_multi_embedding_kernel(%arg0: i32, %arg1: i32, %arg2: memref<8x3xi32, #tpu.memory_space<vmem>>, %arg3: memref<48x32xf32, #tpu.memory_space<vmem>>, %arg4: memref<8x32xf32, #tpu.memory_space<vmem>>) attributes {dimension_semantics = [#tpu.dimension_semantics<parallel>, #tpu.dimension_semantics<parallel>], iteration_bounds = array<i64: 1, 2>, scalar_prefetch = 0 : i64, scratch_operands = 0 : i64, tpu.core_type = #tpu.core_type<tc>, window_params = [{transform_indices = @transform_0, window_bounds = array<i64: 8, 3>}, {pipeline_mode = #tpu.pipeline_mode<synchronous>, transform_indices = @transform_1, window_bounds = array<i64: 48, 32>}, {transform_indices = @transform_2, window_bounds = array<i64: 8, 32>}]} {
    %c0 = arith.constant 0 : index
    %c0_0 = arith.constant 0 : index
    %0 = vector.load %arg2[%c0, %c0_0] : memref<8x3xi32, #tpu.memory_space<vmem>>, vector<8x3xi32>
    %c0_i32 = arith.constant 0 : i32
    %c9_i32 = arith.constant 9 : i32
    %1 = vector.broadcast %c0_i32 : i32 to vector<8x3xi32>
    %2 = arith.maxsi %1, %0 : vector<8x3xi32>
    %3 = vector.broadcast %c9_i32 : i32 to vector<8x3xi32>
    %4 = arith.minsi %3, %2 : vector<8x3xi32>
    %c0_1 = arith.constant 0 : index
    %c0_2 = arith.constant 0 : index
    %5 = vector.load %arg3[%c0_1, %c0_2] : memref<48x32xf32, #tpu.memory_space<vmem>>, vector<48x32xf32>
    %6 = tpu.iota {dimensions = array<i32: 1>} : vector<8x48xi32>
    %7 = vector.extract_strided_slice %4 {offsets = [0, 0], sizes = [8, 1], strides = [1, 1]} : vector<8x3xi32> to vector<8x1xi32>
    %8 = vector.broadcast %7 : vector<8x1xi32> to vector<8x48xi32>
    %9 = arith.cmpi eq, %6, %8 : vector<8x48xi32>
    %10 = vector.extract_strided_slice %4 {offsets = [0, 1], sizes = [8, 1], strides = [1, 1]} : vector<8x3xi32> to vector<8x1xi32>
    %c16_i32 = arith.constant 16 : i32
    %11 = vector.broadcast %c16_i32 : i32 to vector<8x1xi32>
    %12 = arith.addi %10, %11 : vector<8x1xi32>
    %13 = vector.broadcast %12 : vector<8x1xi32> to vector<8x48xi32>
    %14 = arith.cmpi eq, %6, %13 : vector<8x48xi32>
    %15 = arith.ori %9, %14 : vector<8x48xi1>
    %16 = vector.extract_strided_slice %4 {offsets = [0, 2], sizes = [8, 1], strides = [1, 1]} : vector<8x3xi32> to vector<8x1xi32>
    %c32_i32 = arith.constant 32 : i32
    %17 = vector.broadcast %c32_i32 : i32 to vector<8x1xi32>
    %18 = arith.addi %16, %17 : vector<8x1xi32>
    %19 = vector.broadcast %18 : vector<8x1xi32> to vector<8x48xi32>
    %20 = arith.cmpi eq, %6, %19 : vector<8x48xi32>
    %21 = arith.ori %15, %20 : vector<8x48xi1>
    %22 = arith.extui %21 : vector<8x48xi1> to vector<8x48xi32>
    %23 = arith.sitofp %22 : vector<8x48xi32> to vector<8x48xf32>
    %cst = arith.constant dense<0.000000e+00> : vector<8x32xf32>
    %24 = tpu.matmul %23, %5, %cst {dimension_numbers = #tpu.dot_dimension_numbers<[1], [0], [0], [1], [0, 0, 1, 1], [], []>} : vector<8x48xf32>, vector<48x32xf32>, vector<8x32xf32> -> vector<8x32xf32>
    %c0_3 = arith.constant 0 : index
    %c0_4 = arith.constant 0 : index
    %25 = vector.load %arg4[%c0_3, %c0_4] : memref<8x32xf32, #tpu.memory_space<vmem>>, vector<8x32xf32>
    tpu.vector_store %arg4[%c0_3, %c0_4], %24 {strides = array<i32>} : memref<8x32xf32, #tpu.memory_space<vmem>>, vector<8x32xf32>,
    return
  }
  func.func @transform_0(%arg0: i32, %arg1: i32) -> (i32, i32) {
    %c0_i32 = arith.constant 0 : i32
    %c0_i32_0 = arith.constant 0 : i32
    return %arg1, %c0_i32 : i32, i32
  }
  func.func @transform_1(%arg0: i32, %arg1: i32) -> (i32, i32) {
    %c0_i32 = arith.constant 0 : i32
    %c0_i32_0 = arith.constant 0 : i32
    return %c0_i32, %arg0 : i32, i32
  }
  func.func @transform_2(%arg0: i32, %arg1: i32) -> (i32, i32) {
    %c0_i32 = arith.constant 0 : i32
    return %arg1, %arg0 : i32, i32
  }
}

module attributes {stable_mosaic.version = 11 : i64} {
  func.func @_multi_embedding_kernel(%arg0: i32, %arg1: i32, %arg2: memref<8x3xi32, #tpu.memory_space<vmem>>, %arg3: memref<48x32xf32, #tpu.memory_space<vmem>>, %arg4: memref<8x32xf32, #tpu.memory_space<vmem>>) attributes {dimension_semantics = [#tpu.dimension_semantics<parallel>, #tpu.dimension_semantics<parallel>], iteration_bounds = array<i64: 1, 2>, scalar_prefetch = 0 : i64, scratch_operands = 0 : i64, tpu.core_type = #tpu.core_type<tc>, window_params = [{transform_indices = @transform_0, window_bounds = array<i64: 8, 3>}, {transform_indices = @transform_1, window_bounds = array<i64: 48, 32>}, {transform_indices = @transform_2, window_bounds = array<i64: 8, 32>}]} {
    %c0 = arith.constant 0 : index
    %c0_0 = arith.constant 0 : index
    %0 = vector.load %arg2[%c0, %c0_0] : memref<8x3xi32, #tpu.memory_space<vmem>>, vector<8x3xi32>
    %c0_i32 = arith.constant 0 : i32
    %c9_i32 = arith.constant 9 : i32
    %1 = vector.broadcast %c0_i32 : i32 to vector<8x3xi32>
    %2 = arith.maxsi %1, %0 : vector<8x3xi32>
    %3 = vector.broadcast %c9_i32 : i32 to vector<8x3xi32>
    %4 = arith.minsi %3, %2 : vector<8x3xi32>
    %c0_1 = arith.constant 0 : index
    %c0_2 = arith.constant 0 : index
    %5 = vector.load %arg3[%c0_1, %c0_2] : memref<48x32xf32, #tpu.memory_space<vmem>>, vector<48x32xf32>
    %6 = tpu.iota {dimensions = array<i32: 1>} : vector<8x48xi32>
    %7 = vector.extract_strided_slice %4 {offsets = [0, 0], sizes = [8, 1], strides = [1, 1]} : vector<8x3xi32> to vector<8x1xi32>
    %8 = vector.broadcast %7 : vector<8x1xi32> to vector<8x48xi32>
    %9 = arith.cmpi eq, %6, %8 : vector<8x48xi32>
    %10 = vector.extract_strided_slice %4 {offsets = [0, 1], sizes = [8, 1], strides = [1, 1]} : vector<8x3xi32> to vector<8x1xi32>
    %c16_i32 = arith.constant 16 : i32
    %11 = vector.broadcast %c16_i32 : i32 to vector<8x1xi32>
    %12 = arith.addi %10, %11 : vector<8x1xi32>
    %13 = vector.broadcast %12 : vector<8x1xi32> to vector<8x48xi32>
    %14 = arith.cmpi eq, %6, %13 : vector<8x48xi32>
    %15 = arith.ori %9, %14 : vector<8x48xi1>
    %16 = vector.extract_strided_slice %4 {offsets = [0, 2], sizes = [8, 1], strides = [1, 1]} : vector<8x3xi32> to vector<8x1xi32>
    %c32_i32 = arith.constant 32 : i32
    %17 = vector.broadcast %c32_i32 : i32 to vector<8x1xi32>
    %18 = arith.addi %16, %17 : vector<8x1xi32>
    %19 = vector.broadcast %18 : vector<8x1xi32> to vector<8x48xi32>
    %20 = arith.cmpi eq, %6, %19 : vector<8x48xi32>
    %21 = arith.ori %15, %20 : vector<8x48xi1>
    %22 = arith.extui %21 : vector<8x48xi1> to vector<8x48xi32>
    %23 = arith.sitofp %22 : vector<8x48xi32> to vector<8x48xf32>
    %cst = arith.constant dense<0.000000e+00> : vector<8x32xf32>
    %24 = tpu.matmul %23, %5, %cst {dimension_numbers = #tpu.dot_dimension_numbers<[1], [0], [0], [1], [0, 0, 1, 1], [], []>} : vector<8x48xf32>, vector<48x32xf32>, vector<8x32xf32> -> vector<8x32xf32>
    %c0_3 = arith.constant 0 : index
    %c0_4 = arith.constant 0 : index
    %25 = vector.load %arg4[%c0_3, %c0_4] : memref<8x32xf32, #tpu.memory_space<vmem>>, vector<8x32xf32>
    tpu.vector_store %arg4[%c0_3, %c0_4], %24 {strides = array<i32>} : memref<8x32xf32, #tpu.memory_space<vmem>>, vector<8x32xf32>,
    return
  }
  func.func @transform_0(%arg0: i32, %arg1: i32) -> (i32, i32) {
    %c0_i32 = arith.constant 0 : i32
    %c0_i32_0 = arith.constant 0 : i32
    return %arg1, %c0_i32 : i32, i32
  }
  func.func @transform_1(%arg0: i32, %arg1: i32) -> (i32, i32) {
    %c0_i32 = arith.constant 0 : i32
    %c0_i32_0 = arith.constant 0 : i32
    return %c0_i32, %arg0 : i32, i32
  }
  func.func @transform_2(%arg0: i32, %arg1: i32) -> (i32, i32) {
    %c0_i32 = arith.constant 0 : i32
    return %arg1, %arg0 : i32, i32
  }
}

</mosaic_0001>

<llo_original>
// kernel: tpu_custom_call.1
$region0: #{tpu_custom_call.1}
  #allocation0 [shape = 'u32[]', space=smem, size = 0x4, offset = 0x4, fixed_abs, tag = 'smem constant byte address 0x4 - core index']
  #allocation1 [shape = 'u32[144,128]{1,0:T(1,128)}', space=vmem, size = 0x12000, scoped, tag = 'internal scratch']
  %s0 = inlined_call_operand.vmem [shape: s32[16,3], index: 0, kind: input, shape index: {}]
  %s1 = inlined_call_operand.vmem [shape: f32[48,32], index: 1, kind: input, shape index: {}]
  %s2 = inlined_call_operand.hbm [shape: f32[16,32], index: 2, kind: output, shape index: {}]
  %s3 = sld [smem:[#allocation0]]
  $region41: #{tpu_custom_call.1} parent=0
    _
  %s5 = ssub.s32 1, %s3
  %s6 = scalar_select 0, %s5, %s3
  $region1: #{tpu_custom_call.1} parent=0
    #allocation2 [shape = 'u8[8192]{0}', space=vmem, size = 0x2000, scoped, tag = 'output window, operand 0']
    #allocation3 [shape = 's32[2]{0}', space=sflag, size = 0x8, scoped, tag = 'scoped memory for tpu_custom_call.1']
    %7 = vsyncpa [#allocation3], 0
    %s8 = scalar_lea.sflag [#allocation3], 1
    %9 = vsyncpa %s8, 0
    loop: start=0, step=1, limit=4
    $region2: #{tpu_custom_call.1} parent=1 // loop_pre_header
      _
    $region3: #{tpu_custom_call.1} parent=1 // loop_header
      %s11 = sphi 0, %s15
      %p12 = scmp.ge.s32.totalorder %s11, 4
      %s18 = sphi 0, %s30
      %s19 = sphi 0, %s26
      %s20 = sphi 0, %s18
      %s21 = sphi 0, %s19
      %s22 = sphi 0, %s20
      %s23 = sphi 0, %s21
      %s33 = sphi 0, %s35
      %s36 = sphi 0, %s33
      %s37 = sphi 0, %s36
      %s53 = sphi 0, %s37
      %s59 = sphi 0, %s61
      %s62 = sphi 0, %s59
      %s63 = sphi 0, %s62
      %s79 = sphi 0, %s63
      %s87 = sphi 0, %s89
      %s90 = sphi 0, %s87
      %s91 = sphi 0, %s90
      %s107 = sphi 0, %s91
    $region4: #{tpu_custom_call.1} parent=1 // loop_header_branch
      %14 = sbr.rel (%p12) target = $region8
    $region5: #{tpu_custom_call.1} parent=1 // loop_body
      %s16 = ssub.s32 %s11, 1
      %s17 = ssub.s32 %s11, 2
      %s24 = sadd.s32 1, %s19
      %p25 = scmp.ge.s32.totalorder %s24, 2
      %s26 = scalar_select %p25, 0, %s24
      %s27 = sadd.s32 1, %s18
      %s28 = scalar_select %p25, %s27, %s18
      %p29 = scmp.ge.s32.totalorder %s28, 1
      %s30 = scalar_select %p29, 0, %s28
      %s31 = ssub.s32 %s19, %s26
      %p32 = scmp.eq.s32.totalorder %s31, 0
      %s34 = sadd.s32 %s33, 1
      %s35 = scalar_select %p32, %s33, %s34
      %p38 = pneg %p32
      %p39 = scmp.eq.s32.totalorder %s11, 1
      %p40 = por %p38, %p39
      %p41 = scmp.ne.s32.totalorder %s33, %s36
      %p42 = scmp.eq.s32.totalorder %s11, 0
      %p43 = por %p41, %p42
      %p44 = scmp.ne.s32.totalorder %s33, %s36
      %p45 = scmp.eq.s32.totalorder %s16, 1
      %p46 = por %p44, %p45
      %p47 = scmp.ne.s32.totalorder %s36, %s37
      %p48 = scmp.eq.s32.totalorder %s16, 0
      %p49 = por %p47, %p48
      %p50 = scmp.ne.s32.totalorder %s36, %s37
      %p51 = scmp.eq.s32.totalorder %s17, 1
      %p52 = por %p50, %p51
      %p54 = scmp.ne.s32.totalorder %s37, %s53
      %p55 = scmp.eq.s32.totalorder %s17, 0
      %p56 = por %p54, %p55
      %s57 = ssub.s32 %s18, %s30
      %p58 = scmp.eq.s32.totalorder %s57, 0
      %s60 = sadd.s32 %s59, 1
      %s61 = scalar_select %p58, %s59, %s60
      %p64 = pneg %p58
      %p65 = scmp.eq.s32.totalorder %s11, 1
      %p66 = por %p64, %p65
      %p67 = scmp.ne.s32.totalorder %s59, %s62
      %p68 = scmp.eq.s32.totalorder %s11, 0
      %p69 = por %p67, %p68
      %p70 = scmp.ne.s32.totalorder %s59, %s62
      %p71 = scmp.eq.s32.totalorder %s16, 1
      %p72 = por %p70, %p71
      %p73 = scmp.ne.s32.totalorder %s62, %s63
      %p74 = scmp.eq.s32.totalorder %s16, 0
      %p75 = por %p73, %p74
      %p76 = scmp.ne.s32.totalorder %s62, %s63
      %p77 = scmp.eq.s32.totalorder %s17, 1
      %p78 = por %p76, %p77
      %p80 = scmp.ne.s32.totalorder %s63, %s79
      %p81 = scmp.eq.s32.totalorder %s17, 0
      %p82 = por %p80, %p81
      %s83 = ssub.s32 %s19, %s26
      %s84 = ssub.s32 %s18, %s30
      %s85 = sor.u32 %s83, %s84
      %p86 = scmp.eq.s32.totalorder %s85, 0
      %s88 = sadd.s32 %s87, 1
      %s89 = scalar_select %p86, %s87, %s88
      %p92 = pneg %p86
      %p93 = scmp.eq.s32.totalorder %s11, 1
      %p94 = por %p92, %p93
      %p95 = scmp.ne.s32.totalorder %s87, %s90
      %p96 = scmp.eq.s32.totalorder %s11, 0
      %p97 = por %p95, %p96
      %p98 = scmp.ne.s32.totalorder %s87, %s90
      %p99 = scmp.eq.s32.totalorder %s16, 1
      %p100 = por %p98, %p99
      %p101 = scmp.ne.s32.totalorder %s90, %s91
      %p102 = scmp.eq.s32.totalorder %s16, 0
      %p103 = por %p101, %p102
      %p104 = scmp.ne.s32.totalorder %s90, %s91
      %p105 = scmp.eq.s32.totalorder %s17, 1
      %p106 = por %p104, %p105
      %p108 = scmp.ne.s32.totalorder %s91, %s107
      %p109 = scmp.eq.s32.totalorder %s17, 0
      %p110 = por %p108, %p109
      %p111 = scmp.le.s32.totalorder 1, %s11
      %p112 = scmp.lt.s32.totalorder %s11, 3
      %p113 = pnand %p111, %p112
      %p114 = pneg %p113
      // Predicated region
      $region9: #{tpu_custom_call.1} parent=5 // pred_check
        _
      $region10: #{tpu_custom_call.1} parent=5 // pred_check_branch
        %116 = sbr.rel (%p113) target = $region12
      $region11: #{tpu_custom_call.1} parent=5 // pred_region
        %s117 = ssub.s32 %s11, 1
        // Predicated region
        $region13: #{tpu_custom_call.1} parent=11 // pred_check
          %p118 = pneg %p75
        $region14: #{tpu_custom_call.1} parent=11 // pred_check_branch
          %120 = sbr.rel (%p118) target = $region16
        $region15: #{tpu_custom_call.1} parent=11 // pred_region
          %p121 = scmp.lt.s32.totalorder %s20, 0
          %s122 = scalar_select %p121, %s20, 0
          %s123 = smul.addr %s122, 8
          %s124 = scalar_lea.vmem %s1, %s123
        $region16: #{tpu_custom_call.1} parent=11 // pred_fallthru
          _
      $region12: #{tpu_custom_call.1} parent=5 // pred_fallthru
        _
      %p125 = scmp.lt.s32.totalorder %s11, 2
      // Predicated region
      $region17: #{tpu_custom_call.1} parent=5 // pred_check
        %p126 = pneg %p125
      $region18: #{tpu_custom_call.1} parent=5 // pred_check_branch
        %128 = sbr.rel (%p126) target = $region20
      $region19: #{tpu_custom_call.1} parent=5 // pred_region
        // Predicated region
        $region21: #{tpu_custom_call.1} parent=19 // pred_check
          %p129 = pneg %p43
        $region22: #{tpu_custom_call.1} parent=19 // pred_check_branch
          %131 = sbr.rel (%p129) target = $region24
        $region23: #{tpu_custom_call.1} parent=19 // pred_region
          %p132 = scmp.lt.s32.totalorder %s19, 1
          %s133 = scalar_select %p132, %s19, 1
          %s134 = smul.addr %s133, 8
          %s135 = scalar_lea.vmem %s0, %s134
        $region24: #{tpu_custom_call.1} parent=19 // pred_fallthru
          _
      $region20: #{tpu_custom_call.1} parent=5 // pred_fallthru
        _
      %p136 = scmp.le.s32.totalorder 1, %s11
      %p137 = scmp.lt.s32.totalorder %s11, 3
      %p138 = pnand %p136, %p137
      %p139 = pneg %p138
      // Predicated region
      $region25: #{tpu_custom_call.1} parent=5 // pred_check
        _
      $region26: #{tpu_custom_call.1} parent=5 // pred_check_branch
        %141 = sbr.rel (%p138) target = $region28
      $region27: #{tpu_custom_call.1} parent=5 // pred_region
        %s142 = ssub.s32 %s11, 1
        %p143 = scmp.lt.s32.totalorder %s21, 1
        %s144 = scalar_select %p143, %s21, 1
        %s145 = smul.addr %s144, 8
        %s146 = scalar_lea.vmem %s0, %s145
        %p147 = pneg %p49
        %p148 = pneg %p46
        %p149 = scmp.lt.s32.totalorder %s20, 0
        %s150 = scalar_select %p149, %s20, 0
        %s151 = smul.addr %s150, 8
        %s152 = scalar_lea.vmem %s1, %s151
        %p153 = pneg %p75
        %p154 = pneg %p72
        %p155 = pneg %p103
        %p156 = pneg %p100
        %s157 = sand.u32 %s90, 1
        %s158 = scalar_lea.sflag [#allocation3], %s157
        %s159 = sand.u32 %s90, 1
        %s160 = smul.addr %s159, 8
        %s161 = scalar_lea.vmem [#allocation2], %s160
        %p162 = scmp.lt.s32.totalorder %s21, 1
        %s163 = scalar_select %p162, %s21, 1
        %s164 = smul.addr %s163, 8
        %s165 = scalar_lea.vmem %s0, %s164
        %p166 = scmp.lt.s32.totalorder %s20, 0
        %s167 = scalar_select %p166, %s20, 0
        %s168 = smul.addr %s167, 8
        %s169 = scalar_lea.vmem %s1, %s168
        %v170 = vld [vmem:[%s165] sm:$0xff]
        %vm171 = vcmp.gt.s32.totalorder %v170, 0
        %v172 = vsel %vm171, %v170, 0
        %vm173 = vcmp.lt.s32.totalorder %v172, 9
        %v174 = vsel %vm173, %v172, 9
        %v175 = vld [vmem:[%s169] sm:$0xff]
        %v176 = vld [vmem:[%s169 + $0x8] sm:$0xff]
        %v177 = vld [vmem:[%s169 + $0x10] sm:$0xff]
        %v178 = vld [vmem:[%s169 + $0x18] sm:$0xff]
        %v179 = vld [vmem:[%s169 + $0x20] sm:$0xff]
        %v180 = vld [vmem:[%s169 + $0x28] sm:$0xff]
        %v181 = vlaneseq
        %v182 = vand.u32 %v181, 127
        %183 = vset.pattern.permute.xlu0 0
        %184 = vperm.xlu0 %183, %v174
        %v185 = vpop.permute.xlu0 %184
        %vm186 = vcmp.eq.s32.totalorder %v182, %v185
        %v187 = vadd.s32 %v174, 16
        %188 = vset.pattern.permute.xlu0 1
        %189 = vperm.xlu0 %188, %v187
        %v190 = vpop.permute.xlu0 %189
        %vm191 = vcmp.eq.s32.totalorder %v182, %v190
        %vm192 = vmor %vm186, %vm191
        %v193 = vadd.s32 %v174, 32
        %194 = vset.pattern.permute.xlu0 2
        %195 = vperm.xlu0 %194, %v193
        %v196 = vpop.permute.xlu0 %195
        %vm197 = vcmp.eq.s32.totalorder %v182, %v196
        %vm198 = vmor %vm192, %vm197
        %v199 = vsel %vm198, 1, 0
        %v200 = vcvt.s32.f32 %v199
        %vm201 = vcmask 392192
        %v203 = vsel %vm201, %v200, 0
        %205 = vmatprep.subr.mxu0 0.0
        %206 = vmatpush1.msra.mxu0 %v175
        %207 = vmatprep.subr.mxu0 0.0
        %208 = vmatpush1.msra.mxu0 %v176
        %209 = vmatprep.subr.mxu0 0.0
        %210 = vmatpush1.msra.mxu0 %v177
        %211 = vmatprep.subr.mxu0 0.0
        %212 = vmatpush1.msra.mxu0 %v178
        %213 = vmatprep.subr.mxu0 0.0
        %214 = vmatpush1.msra.mxu0 %v179
        %215 = vmatprep.subr.mxu0 0.0
        %216 = vmatpush1.msra.mxu0 %v180
        %217 = vmatprep.subr.mxu0 0.0
        %218 = vmatpush1.msra.mxu0 0.0
        %219 = vmatprep.subr.mxu0 0.0
        %220 = vmatpush1.msra.mxu0 0.0
        %221 = vmatprep.subr.mxu0 0.0
        %222 = vmatpush1.msra.mxu0 0.0
        %223 = vmatprep.subr.mxu0 0.0
        %224 = vmatpush1.msra.mxu0 0.0
        %225 = vmatprep.subr.mxu0 0.0
        %226 = vmatpush1.msra.mxu0 0.0
        %227 = vmatprep.subr.mxu0 0.0
        %228 = vmatpush1.msra.mxu0 0.0
        %229 = vmatprep.subr.mxu0 0.0
        %230 = vmatpush1.msra.mxu0 0.0
        %231 = vmatprep.subr.mxu0 0.0
        %232 = vmatpush1.msra.mxu0 0.0
        %233 = vmatprep.subr.mxu0 0.0
        %234 = vmatpush1.msra.mxu0 0.0
        %235 = vmatprep.subr.mxu0 0.0
        %236 = vmatpush1.msra.mxu0 0.0
        %237 = vmatprep.subr.mxu0 0.0
        %238 = vmatpush1.msra.mxu0 0.0
        %239 = vmatprep.subr.mxu0 0.0
        %240 = vmatpush1.msra.mxu0 0.0
        %241 = vmatprep.subr.mxu0 0.0
        %242 = vmatpush1.msra.mxu0 0.0
        %243 = vmatprep.subr.mxu0 0.0
        %244 = vmatpush1.msra.mxu0 0.0
        %245 = vmatprep.subr.mxu0 0.0
        %246 = vmatpush1.msra.mxu0 0.0
        %247 = vmatprep.subr.mxu0 0.0
        %248 = vmatpush1.msra.mxu0 0.0
        %249 = vmatprep.subr.mxu0 0.0
        %250 = vmatpush1.msra.mxu0 0.0
        %251 = vmatprep.subr.mxu0 0.0
        %252 = vmatpush1.msra.mxu0 0.0
        %253 = vmatprep.subr.mxu0 0.0
        %254 = vmatpush1.msra.mxu0 0.0
        %255 = vmatprep.subr.mxu0 0.0
        %256 = vmatpush1.msra.mxu0 0.0
        %257 = vmatprep.subr.mxu0 0.0
        %258 = vmatpush1.msra.mxu0 0.0
        %259 = vmatprep.subr.mxu0 0.0
        %260 = vmatpush1.msra.mxu0 0.0
        %261 = vmatprep.subr.mxu0 0.0
        %262 = vmatpush1.msra.mxu0 0.0
        %263 = vmatprep.subr.mxu0 0.0
        %264 = vmatpush1.msra.mxu0 0.0
        %265 = vmatprep.subr.mxu0 0.0
        %266 = vmatpush1.msra.mxu0 0.0
        %267 = vmatprep.subr.mxu0 0.0
        %268 = vmatpush1.msra.mxu0 0.0
        %269 = vmatprep.mubr.f32.mxu0 0.0
        %270 = vmatmul.mubr.f32.gmra.mrb[0].mxu0 %v203
        %v271 = vpop.f32.mrb[0].mxu0
        %v272 = vadd.f32 0.0, %v271
        %v273 = vpop.f32.mrb[0].mxu0
        %274 = vdwg.mxu0
        %vm275 = vcmask 261120
        %276 = vst.msk [vmem:[%s161] sm:$0xff] %vm275, %v272
        %s277 = sand.u32 %s90, 1
        %s278 = scalar_lea.sflag [#allocation3], %s277
        %s279 = sand.u32 %s90, 1
        %s280 = smul.addr %s279, 8
        %s281 = scalar_lea.vmem [#allocation2], %s280
        // Predicated region
        $region29: #{tpu_custom_call.1} parent=27 // pred_check
          %p282 = pneg %p100
        $region30: #{tpu_custom_call.1} parent=27 // pred_check_branch
          %284 = sbr.rel (%p282) target = $region32
        $region31: #{tpu_custom_call.1} parent=27 // pred_region
          %s286 = ssub.s32 128, 128
          %287 = vsyncadd %s278, %s286
          %s288 = sadd.s32 %s20, %s21
          %s289 = smul.addr %s288, 128
          %s290 = scalar_lea.hbm %s2, %s289
          %s292 = sshll.u32 %s281, 4
          %s293 = int_to_ptr.vmem [resolvable:$true] %s292
          %295 = dma.vmem_to_hbm [thread:$0]  %s293, 128, %s290, %s278
        $region32: #{tpu_custom_call.1} parent=27 // pred_fallthru
          _
      $region28: #{tpu_custom_call.1} parent=5 // pred_fallthru
        _
      %p296 = scmp.le.s32.totalorder 2, %s11
      // Predicated region
      $region33: #{tpu_custom_call.1} parent=5 // pred_check
        %p297 = pneg %p296
      $region34: #{tpu_custom_call.1} parent=5 // pred_check_branch
        %299 = sbr.rel (%p297) target = $region36
      $region35: #{tpu_custom_call.1} parent=5 // pred_region
        %s300 = ssub.s32 %s11, 2
        // Predicated region
        $region37: #{tpu_custom_call.1} parent=35 // pred_check
          %p301 = pneg %p106
        $region38: #{tpu_custom_call.1} parent=35 // pred_check_branch
          %303 = sbr.rel (%p301) target = $region40
        $region39: #{tpu_custom_call.1} parent=35 // pred_region
          %s304 = sand.u32 %s91, 1
          %s305 = scalar_lea.sflag [#allocation3], %s304
          %s306 = sand.u32 %s91, 1
          %s307 = smul.addr %s306, 8
          %s308 = scalar_lea.vmem [#allocation2], %s307
          %309 = dma.done %s305, 128
        $region40: #{tpu_custom_call.1} parent=35 // pred_fallthru
          _
      $region36: #{tpu_custom_call.1} parent=5 // pred_fallthru
        _
    $region6: #{tpu_custom_call.1} parent=1 // loop_footer
      %s15 = sadd.s32 1, %s11
    $region7: #{tpu_custom_call.1} parent=1 // loop_footer_branch
      %10 = sbr.rel target = $region3
    $region8: #{tpu_custom_call.1} parent=1 // loop_exit
      _
    %310 = vsyncpa [#allocation3], 1
    %s311 = scalar_lea.sflag [#allocation3], 1
    %312 = vsyncpa %s311, 1

// kernel: tpu_custom_call.1
$region0: #{tpu_custom_call.1}
  #allocation0 [shape = 'u32[]', space=smem, size = 0x4, offset = 0x4, fixed_abs, tag = 'smem constant byte address 0x4 - core index']
  #allocation1 [shape = 'u32[144,128]{1,0:T(1,128)}', space=vmem, size = 0x12000, scoped, tag = 'internal scratch']
  %s0 = inlined_call_operand.vmem [shape: s32[16,3], index: 0, kind: input, shape index: {}]
  %s1 = inlined_call_operand.vmem [shape: f32[48,32], index: 1, kind: input, shape index: {}]
  %s2 = inlined_call_operand.hbm [shape: f32[16,32], index: 2, kind: output, shape index: {}]
  %s3 = sld [smem:[#allocation0]]
  $region41: #{tpu_custom_call.1} parent=0
    _
  %s5 = ssub.s32 1, %s3
  %s6 = scalar_select 0, %s5, %s3
  $region1: #{tpu_custom_call.1} parent=0
    #allocation2 [shape = 'u8[8192]{0}', space=vmem, size = 0x2000, scoped, tag = 'output window, operand 0']
    #allocation3 [shape = 's32[2]{0}', space=sflag, size = 0x8, scoped, tag = 'scoped memory for tpu_custom_call.1']
    %7 = vsyncpa [#allocation3], 0
    %s8 = scalar_lea.sflag [#allocation3], 1
    %9 = vsyncpa %s8, 0
    loop: start=0, step=1, limit=4
    $region2: #{tpu_custom_call.1} parent=1 // loop_pre_header
      _
    $region3: #{tpu_custom_call.1} parent=1 // loop_header
      %s11 = sphi 0, %s15
      %p12 = scmp.ge.s32.totalorder %s11, 4
      %s18 = sphi 0, %s30
      %s19 = sphi 0, %s26
      %s20 = sphi 0, %s18
      %s21 = sphi 0, %s19
      %s22 = sphi 0, %s20
      %s23 = sphi 0, %s21
      %s33 = sphi 0, %s35
      %s36 = sphi 0, %s33
      %s37 = sphi 0, %s36
      %s53 = sphi 0, %s37
      %s59 = sphi 0, %s61
      %s62 = sphi 0, %s59
      %s63 = sphi 0, %s62
      %s79 = sphi 0, %s63
      %s87 = sphi 0, %s89
      %s90 = sphi 0, %s87
      %s91 = sphi 0, %s90
      %s107 = sphi 0, %s91
    $region4: #{tpu_custom_call.1} parent=1 // loop_header_branch
      %14 = sbr.rel (%p12) target = $region8
    $region5: #{tpu_custom_call.1} parent=1 // loop_body
      %s16 = ssub.s32 %s11, 1
      %s17 = ssub.s32 %s11, 2
      %s24 = sadd.s32 1, %s19
      %p25 = scmp.ge.s32.totalorder %s24, 2
      %s26 = scalar_select %p25, 0, %s24
      %s27 = sadd.s32 1, %s18
      %s28 = scalar_select %p25, %s27, %s18
      %p29 = scmp.ge.s32.totalorder %s28, 1
      %s30 = scalar_select %p29, 0, %s28
      %s31 = ssub.s32 %s19, %s26
      %p32 = scmp.eq.s32.totalorder %s31, 0
      %s34 = sadd.s32 %s33, 1
      %s35 = scalar_select %p32, %s33, %s34
      %p38 = pneg %p32
      %p39 = scmp.eq.s32.totalorder %s11, 1
      %p40 = por %p38, %p39
      %p41 = scmp.ne.s32.totalorder %s33, %s36
      %p42 = scmp.eq.s32.totalorder %s11, 0
      %p43 = por %p41, %p42
      %p44 = scmp.ne.s32.totalorder %s33, %s36
      %p45 = scmp.eq.s32.totalorder %s16, 1
      %p46 = por %p44, %p45
      %p47 = scmp.ne.s32.totalorder %s36, %s37
      %p48 = scmp.eq.s32.totalorder %s16, 0
      %p49 = por %p47, %p48
      %p50 = scmp.ne.s32.totalorder %s36, %s37
      %p51 = scmp.eq.s32.totalorder %s17, 1
      %p52 = por %p50, %p51
      %p54 = scmp.ne.s32.totalorder %s37, %s53
      %p55 = scmp.eq.s32.totalorder %s17, 0
      %p56 = por %p54, %p55
      %s57 = ssub.s32 %s18, %s30
      %p58 = scmp.eq.s32.totalorder %s57, 0
      %s60 = sadd.s32 %s59, 1
      %s61 = scalar_select %p58, %s59, %s60
      %p64 = pneg %p58
      %p65 = scmp.eq.s32.totalorder %s11, 1
      %p66 = por %p64, %p65
      %p67 = scmp.ne.s32.totalorder %s59, %s62
      %p68 = scmp.eq.s32.totalorder %s11, 0
      %p69 = por %p67, %p68
      %p70 = scmp.ne.s32.totalorder %s59, %s62
      %p71 = scmp.eq.s32.totalorder %s16, 1
      %p72 = por %p70, %p71
      %p73 = scmp.ne.s32.totalorder %s62, %s63
      %p74 = scmp.eq.s32.totalorder %s16, 0
      %p75 = por %p73, %p74
      %p76 = scmp.ne.s32.totalorder %s62, %s63
      %p77 = scmp.eq.s32.totalorder %s17, 1
      %p78 = por %p76, %p77
      %p80 = scmp.ne.s32.totalorder %s63, %s79
      %p81 = scmp.eq.s32.totalorder %s17, 0
      %p82 = por %p80, %p81
      %s83 = ssub.s32 %s19, %s26
      %s84 = ssub.s32 %s18, %s30
      %s85 = sor.u32 %s83, %s84
      %p86 = scmp.eq.s32.totalorder %s85, 0
      %s88 = sadd.s32 %s87, 1
      %s89 = scalar_select %p86, %s87, %s88
      %p92 = pneg %p86
      %p93 = scmp.eq.s32.totalorder %s11, 1
      %p94 = por %p92, %p93
      %p95 = scmp.ne.s32.totalorder %s87, %s90
      %p96 = scmp.eq.s32.totalorder %s11, 0
      %p97 = por %p95, %p96
      %p98 = scmp.ne.s32.totalorder %s87, %s90
      %p99 = scmp.eq.s32.totalorder %s16, 1
      %p100 = por %p98, %p99
      %p101 = scmp.ne.s32.totalorder %s90, %s91
      %p102 = scmp.eq.s32.totalorder %s16, 0
      %p103 = por %p101, %p102
      %p104 = scmp.ne.s32.totalorder %s90, %s91
      %p105 = scmp.eq.s32.totalorder %s17, 1
      %p106 = por %p104, %p105
      %p108 = scmp.ne.s32.totalorder %s91, %s107
      %p109 = scmp.eq.s32.totalorder %s17, 0
      %p110 = por %p108, %p109
      %p111 = scmp.le.s32.totalorder 1, %s11
      %p112 = scmp.lt.s32.totalorder %s11, 3
      %p113 = pnand %p111, %p112
      %p114 = pneg %p113
      // Predicated region
      $region9: #{tpu_custom_call.1} parent=5 // pred_check
        _
      $region10: #{tpu_custom_call.1} parent=5 // pred_check_branch
        %116 = sbr.rel (%p113) target = $region12
      $region11: #{tpu_custom_call.1} parent=5 // pred_region
        %s117 = ssub.s32 %s11, 1
        // Predicated region
        $region13: #{tpu_custom_call.1} parent=11 // pred_check
          %p118 = pneg %p75
        $region14: #{tpu_custom_call.1} parent=11 // pred_check_branch
          %120 = sbr.rel (%p118) target = $region16
        $region15: #{tpu_custom_call.1} parent=11 // pred_region
          %p121 = scmp.lt.s32.totalorder %s20, 0
          %s122 = scalar_select %p121, %s20, 0
          %s123 = smul.addr %s122, 8
          %s124 = scalar_lea.vmem %s1, %s123
        $region16: #{tpu_custom_call.1} parent=11 // pred_fallthru
          _
      $region12: #{tpu_custom_call.1} parent=5 // pred_fallthru
        _
      %p125 = scmp.lt.s32.totalorder %s11, 2
      // Predicated region
      $region17: #{tpu_custom_call.1} parent=5 // pred_check
        %p126 = pneg %p125
      $region18: #{tpu_custom_call.1} parent=5 // pred_check_branch
        %128 = sbr.rel (%p126) target = $region20
      $region19: #{tpu_custom_call.1} parent=5 // pred_region
        // Predicated region
        $region21: #{tpu_custom_call.1} parent=19 // pred_check
          %p129 = pneg %p43
        $region22: #{tpu_custom_call.1} parent=19 // pred_check_branch
          %131 = sbr.rel (%p129) target = $region24
        $region23: #{tpu_custom_call.1} parent=19 // pred_region
          %p132 = scmp.lt.s32.totalorder %s19, 1
          %s133 = scalar_select %p132, %s19, 1
          %s134 = smul.addr %s133, 8
          %s135 = scalar_lea.vmem %s0, %s134
        $region24: #{tpu_custom_call.1} parent=19 // pred_fallthru
          _
      $region20: #{tpu_custom_call.1} parent=5 // pred_fallthru
        _
      %p136 = scmp.le.s32.totalorder 1, %s11
      %p137 = scmp.lt.s32.totalorder %s11, 3
      %p138 = pnand %p136, %p137
      %p139 = pneg %p138
      // Predicated region
      $region25: #{tpu_custom_call.1} parent=5 // pred_check
        _
      $region26: #{tpu_custom_call.1} parent=5 // pred_check_branch
        %141 = sbr.rel (%p138) target = $region28
      $region27: #{tpu_custom_call.1} parent=5 // pred_region
        %s142 = ssub.s32 %s11, 1
        %p143 = scmp.lt.s32.totalorder %s21, 1
        %s144 = scalar_select %p143, %s21, 1
        %s145 = smul.addr %s144, 8
        %s146 = scalar_lea.vmem %s0, %s145
        %p147 = pneg %p49
        %p148 = pneg %p46
        %p149 = scmp.lt.s32.totalorder %s20, 0
        %s150 = scalar_select %p149, %s20, 0
        %s151 = smul.addr %s150, 8
        %s152 = scalar_lea.vmem %s1, %s151
        %p153 = pneg %p75
        %p154 = pneg %p72
        %p155 = pneg %p103
        %p156 = pneg %p100
        %s157 = sand.u32 %s90, 1
        %s158 = scalar_lea.sflag [#allocation3], %s157
        %s159 = sand.u32 %s90, 1
        %s160 = smul.addr %s159, 8
        %s161 = scalar_lea.vmem [#allocation2], %s160
        %p162 = scmp.lt.s32.totalorder %s21, 1
        %s163 = scalar_select %p162, %s21, 1
        %s164 = smul.addr %s163, 8
        %s165 = scalar_lea.vmem %s0, %s164
        %p166 = scmp.lt.s32.totalorder %s20, 0
        %s167 = scalar_select %p166, %s20, 0
        %s168 = smul.addr %s167, 8
        %s169 = scalar_lea.vmem %s1, %s168
        %v170 = vld [vmem:[%s165] sm:$0xff]
        %vm171 = vcmp.gt.s32.totalorder %v170, 0
        %v172 = vsel %vm171, %v170, 0
        %vm173 = vcmp.lt.s32.totalorder %v172, 9
        %v174 = vsel %vm173, %v172, 9
        %v175 = vld [vmem:[%s169] sm:$0xff]
        %v176 = vld [vmem:[%s169 + $0x8] sm:$0xff]
        %v177 = vld [vmem:[%s169 + $0x10] sm:$0xff]
        %v178 = vld [vmem:[%s169 + $0x18] sm:$0xff]
        %v179 = vld [vmem:[%s169 + $0x20] sm:$0xff]
        %v180 = vld [vmem:[%s169 + $0x28] sm:$0xff]
        %v181 = vlaneseq
        %v182 = vand.u32 %v181, 127
        %183 = vset.pattern.permute.xlu0 0
        %184 = vperm.xlu0 %183, %v174
        %v185 = vpop.permute.xlu0 %184
        %vm186 = vcmp.eq.s32.totalorder %v182, %v185
        %v187 = vadd.s32 %v174, 16
        %188 = vset.pattern.permute.xlu0 1
        %189 = vperm.xlu0 %188, %v187
        %v190 = vpop.permute.xlu0 %189
        %vm191 = vcmp.eq.s32.totalorder %v182, %v190
        %vm192 = vmor %vm186, %vm191
        %v193 = vadd.s32 %v174, 32
        %194 = vset.pattern.permute.xlu0 2
        %195 = vperm.xlu0 %194, %v193
        %v196 = vpop.permute.xlu0 %195
        %vm197 = vcmp.eq.s32.totalorder %v182, %v196
        %vm198 = vmor %vm192, %vm197
        %v199 = vsel %vm198, 1, 0
        %v200 = vcvt.s32.f32 %v199
        %vm201 = vcmask 392192
        %v203 = vsel %vm201, %v200, 0
        %205 = vmatprep.subr.mxu0 0.0
        %206 = vmatpush1.msra.mxu0 %v175
        %207 = vmatprep.subr.mxu0 0.0
        %208 = vmatpush1.msra.mxu0 %v176
        %209 = vmatprep.subr.mxu0 0.0
        %210 = vmatpush1.msra.mxu0 %v177
        %211 = vmatprep.subr.mxu0 0.0
        %212 = vmatpush1.msra.mxu0 %v178
        %213 = vmatprep.subr.mxu0 0.0
        %214 = vmatpush1.msra.mxu0 %v179
        %215 = vmatprep.subr.mxu0 0.0
        %216 = vmatpush1.msra.mxu0 %v180
        %217 = vmatprep.subr.mxu0 0.0
        %218 = vmatpush1.msra.mxu0 0.0
        %219 = vmatprep.subr.mxu0 0.0
        %220 = vmatpush1.msra.mxu0 0.0
        %221 = vmatprep.subr.mxu0 0.0
        %222 = vmatpush1.msra.mxu0 0.0
        %223 = vmatprep.subr.mxu0 0.0
        %224 = vmatpush1.msra.mxu0 0.0
        %225 = vmatprep.subr.mxu0 0.0
        %226 = vmatpush1.msra.mxu0 0.0
        %227 = vmatprep.subr.mxu0 0.0
        %228 = vmatpush1.msra.mxu0 0.0
        %229 = vmatprep.subr.mxu0 0.0
        %230 = vmatpush1.msra.mxu0 0.0
        %231 = vmatprep.subr.mxu0 0.0
        %232 = vmatpush1.msra.mxu0 0.0
        %233 = vmatprep.subr.mxu0 0.0
        %234 = vmatpush1.msra.mxu0 0.0
        %235 = vmatprep.subr.mxu0 0.0
        %236 = vmatpush1.msra.mxu0 0.0
        %237 = vmatprep.subr.mxu0 0.0
        %238 = vmatpush1.msra.mxu0 0.0
        %239 = vmatprep.subr.mxu0 0.0
        %240 = vmatpush1.msra.mxu0 0.0
        %241 = vmatprep.subr.mxu0 0.0
        %242 = vmatpush1.msra.mxu0 0.0
        %243 = vmatprep.subr.mxu0 0.0
        %244 = vmatpush1.msra.mxu0 0.0
        %245 = vmatprep.subr.mxu0 0.0
        %246 = vmatpush1.msra.mxu0 0.0
        %247 = vmatprep.subr.mxu0 0.0
        %248 = vmatpush1.msra.mxu0 0.0
        %249 = vmatprep.subr.mxu0 0.0
        %250 = vmatpush1.msra.mxu0 0.0
        %251 = vmatprep.subr.mxu0 0.0
        %252 = vmatpush1.msra.mxu0 0.0
        %253 = vmatprep.subr.mxu0 0.0
        %254 = vmatpush1.msra.mxu0 0.0
        %255 = vmatprep.subr.mxu0 0.0
        %256 = vmatpush1.msra.mxu0 0.0
        %257 = vmatprep.subr.mxu0 0.0
        %258 = vmatpush1.msra.mxu0 0.0
        %259 = vmatprep.subr.mxu0 0.0
        %260 = vmatpush1.msra.mxu0 0.0
        %261 = vmatprep.subr.mxu0 0.0
        %262 = vmatpush1.msra.mxu0 0.0
        %263 = vmatprep.subr.mxu0 0.0
        %264 = vmatpush1.msra.mxu0 0.0
        %265 = vmatprep.subr.mxu0 0.0
        %266 = vmatpush1.msra.mxu0 0.0
        %267 = vmatprep.subr.mxu0 0.0
        %268 = vmatpush1.msra.mxu0 0.0
        %269 = vmatprep.mubr.f32.mxu0 0.0
        %270 = vmatmul.mubr.f32.gmra.mrb[0].mxu0 %v203
        %v271 = vpop.f32.mrb[0].mxu0
        %v272 = vadd.f32 0.0, %v271
        %v273 = vpop.f32.mrb[0].mxu0
        %274 = vdwg.mxu0
        %vm275 = vcmask 261120
        %276 = vst.msk [vmem:[%s161] sm:$0xff] %vm275, %v272
        %s277 = sand.u32 %s90, 1
        %s278 = scalar_lea.sflag [#allocation3], %s277
        %s279 = sand.u32 %s90, 1
        %s280 = smul.addr %s279, 8
        %s281 = scalar_lea.vmem [#allocation2], %s280
        // Predicated region
        $region29: #{tpu_custom_call.1} parent=27 // pred_check
          %p282 = pneg %p100
        $region30: #{tpu_custom_call.1} parent=27 // pred_check_branch
          %284 = sbr.rel (%p282) target = $region32
        $region31: #{tpu_custom_call.1} parent=27 // pred_region
          %s286 = ssub.s32 128, 128
          %287 = vsyncadd %s278, %s286
          %s288 = sadd.s32 %s20, %s21
          %s289 = smul.addr %s288, 128
          %s290 = scalar_lea.hbm %s2, %s289
          %s292 = sshll.u32 %s281, 4
          %s293 = int_to_ptr.vmem [resolvable:$true] %s292
          %295 = dma.vmem_to_hbm [thread:$0]  %s293, 128, %s290, %s278
        $region32: #{tpu_custom_call.1} parent=27 // pred_fallthru
          _
      $region28: #{tpu_custom_call.1} parent=5 // pred_fallthru
        _
      %p296 = scmp.le.s32.totalorder 2, %s11
      // Predicated region
      $region33: #{tpu_custom_call.1} parent=5 // pred_check
        %p297 = pneg %p296
      $region34: #{tpu_custom_call.1} parent=5 // pred_check_branch
        %299 = sbr.rel (%p297) target = $region36
      $region35: #{tpu_custom_call.1} parent=5 // pred_region
        %s300 = ssub.s32 %s11, 2
        // Predicated region
        $region37: #{tpu_custom_call.1} parent=35 // pred_check
          %p301 = pneg %p106
        $region38: #{tpu_custom_call.1} parent=35 // pred_check_branch
          %303 = sbr.rel (%p301) target = $region40
        $region39: #{tpu_custom_call.1} parent=35 // pred_region
          %s304 = sand.u32 %s91, 1
          %s305 = scalar_lea.sflag [#allocation3], %s304
          %s306 = sand.u32 %s91, 1
          %s307 = smul.addr %s306, 8
          %s308 = scalar_lea.vmem [#allocation2], %s307
          %309 = dma.done %s305, 128
        $region40: #{tpu_custom_call.1} parent=35 // pred_fallthru
          _
      $region36: #{tpu_custom_call.1} parent=5 // pred_fallthru
        _
    $region6: #{tpu_custom_call.1} parent=1 // loop_footer
      %s15 = sadd.s32 1, %s11
    $region7: #{tpu_custom_call.1} parent=1 // loop_footer_branch
      %10 = sbr.rel target = $region3
    $region8: #{tpu_custom_call.1} parent=1 // loop_exit
      _
    %310 = vsyncpa [#allocation3], 1
    %s311 = scalar_lea.sflag [#allocation3], 1
    %312 = vsyncpa %s311, 1

</llo_original>
